<compile_context>
chip_gen: v7x
topology: tpu7x:2x2x1
jax: 0.10.0
libtpu: 0.0.40
codegen_flags: <defaults>
</compile_context>

<pallas_src>
import math

import jax
import jax.numpy as jnp
from jax.experimental import pallas as pl
from jax.experimental.pallas import tpu as pltpu


def _round_up(x: int, m: int) -> int:
    return ((x + m - 1) // m) * m


def encoder_kernel(x_ref, w1_ref, b1_ref, w2_ref, b2_ref, o_ref):
    # Downcast the streamed activation tile to bf16 on the VPU (cheap; the
    # kernel is HBM-bound on x), then single-pass bf16 MXU matmul w/ f32 acc.
    x_bf = x_ref[...].astype(jnp.bfloat16)
    h = jnp.dot(x_bf, w1_ref[...], preferred_element_type=jnp.float32)
    h = jnp.maximum(h + b1_ref[...], 0.0)                 # bias + ReLU in f32 (VPU)
    y = jnp.dot(h.astype(jnp.bfloat16), w2_ref[...],
                preferred_element_type=jnp.float32)       # second MXU matmul
    y = y + b2_ref[...]
    # Sigmoid -> EUP exp path; store lane-dense (out block padded to 128 lanes).
    o_ref[...] = jax.nn.sigmoid(y).astype(o_ref.dtype)


def encoder_forward(x, w1, b1, w2, b2, *, block_b: int = 512):
    """Forward pass of Encoder.

    x:  (..., input_size)
    w1: (input_size, hidden)   (already transposed vs. PyTorch nn.Linear.weight)
    b1: (hidden,) or (1, hidden)
    w2: (hidden, output_size)
    b2: (output_size,) or (1, output_size)
    Returns (..., output_size) in x.dtype.
    """
    orig_shape = x.shape
    in_size = w1.shape[0]
    hidden = w1.shape[1]
    out_size = w2.shape[1]
    x2 = x.reshape(-1, in_size)
    B = x2.shape[0]

    # --- lane-dense output: pad feature dim to a multiple of 128 (zero cols).
    OUT_P = _round_up(max(out_size, 128), 128)

    # --- batch tile: multiple of 16 (covers bf16 sublane packing), capped so
    #     the streamed x/out tiles (double-buffered) stay well inside VMEM.
    TB = min(block_b, _round_up(B, 16))
    x_bytes = jnp.dtype(x.dtype).itemsize
    per_row_bytes = in_size * x_bytes + OUT_P * x_bytes
    vmem_budget = 24 * 1024 * 1024  # leave headroom for weights + compiler scratch
    max_tb = max(16, (vmem_budget // (2 * max(per_row_bytes, 1))) // 16 * 16)
    TB = max(16, min(TB, max_tb))
    B_pad = _round_up(B, TB)
    if B_pad != B:
        x2 = jnp.pad(x2, ((0, B_pad - B), (0, 0)))

    # --- weights: small & VMEM-resident -> one-time bf16 cast is cheap.
    w1_bf = w1.astype(jnp.bfloat16)
    w2_bf = jnp.pad(w2, ((0, 0), (0, OUT_P - out_size))).astype(jnp.bfloat16)
    b1_f = b1.reshape(1, -1).astype(jnp.float32)
    b2_f = jnp.pad(b2.reshape(1, -1), ((0, 0), (0, OUT_P - out_size))).astype(jnp.float32)

    grid = (B_pad // TB,)

    cost = pl.CostEstimate(
        flops=2 * B_pad * (in_size * hidden + hidden * OUT_P),
        transcendentals=B_pad * OUT_P,
        bytes_accessed=(B_pad * in_size * x_bytes                       # x tiles
                        + B_pad * OUT_P * x_bytes                       # output
                        + (in_size * hidden + hidden * OUT_P) * 2       # bf16 weights
                        + (hidden + OUT_P) * 4),                        # f32 biases
    )

    out = pl.pallas_call(
        encoder_kernel,
        out_shape=jax.ShapeDtypeStruct((B_pad, OUT_P), x.dtype),
        grid_spec=pltpu.PrefetchScalarGridSpec(
            num_scalar_prefetch=0,
            grid=grid,
            in_specs=[
                pl.BlockSpec((TB, in_size), lambda i: (i, 0)),        # x: streamed
                pl.BlockSpec((in_size, hidden), lambda i: (0, 0)),    # w1: resident
                pl.BlockSpec((1, hidden), lambda i: (0, 0)),          # b1: resident
                pl.BlockSpec((hidden, OUT_P), lambda i: (0, 0)),      # w2: resident
                pl.BlockSpec((1, OUT_P), lambda i: (0, 0)),           # b2: resident
            ],
            out_specs=pl.BlockSpec((TB, OUT_P), lambda i: (i, 0)),
        ),
        compiler_params=pltpu.CompilerParams(
            dimension_semantics=("parallel",),
            vmem_limit_bytes=32 * 1024 * 1024,
        ),
        cost_estimate=cost,
    )(x2, w1_bf, b1_f, w2_bf, b2_f)

    out = out[:B, :out_size]
    return out.reshape(orig_shape[:-1] + (out_size,))


def init_encoder_params(key, input_size, hidden_size, output_size, dtype=jnp.float32):
    """Deterministic init mimicking PyTorch nn.Linear default (uniform +-1/sqrt(fan_in))."""
    k1, k2, k3, k4 = jax.random.split(key, 4)
    bound1 = 1.0 / math.sqrt(input_size)
    bound2 = 1.0 / math.sqrt(hidden_size)
    # Stored already transposed: (in_features, out_features).
    w1 = jax.random.uniform(k1, (input_size, hidden_size), dtype, -bound1, bound1)
    b1 = jax.random.uniform(k2, (hidden_size,), dtype, -bound1, bound1)
    w2 = jax.random.uniform(k3, (hidden_size, output_size), dtype, -bound2, bound2)
    b2 = jax.random.uniform(k4, (output_size,), dtype, -bound2, bound2)
    return w1, b1, w2, b2


def encoder_ref(x, w1, b1, w2, b2):
    """Pure-JAX f32 reference of the PyTorch forward for validation."""
    h = jnp.maximum(x @ w1 + b1.reshape(1, -1), 0.0)
    return jax.nn.sigmoid(h @ w2 + b2.reshape(1, -1))


if __name__ == "__main__":
    # Small but non-trivial shapes: batch is not a multiple of the tile, so the
    # batch-padding path and the multi-step grid are both exercised.
    batch, input_size, hidden_size, output_size = 384, 32, 64, 16
    block_b = 256  # -> padded batch 512, grid = (2,)

    key = jax.random.PRNGKey(0)
    kx, kp = jax.random.split(key)
    x = jax.random.normal(kx, (batch, input_size), jnp.float32)
    w1, b1, w2, b2 = init_encoder_params(kp, input_size, hidden_size, output_size)

    out = encoder_forward(x, w1, b1, w2, b2, block_b=block_b)
    out = jax.block_until_ready(out)

    ref = encoder_ref(x, w1, b1, w2, b2)
    assert out.shape == (batch, output_size)
    # bf16 MXU matmuls with f32 accumulation: loosened tolerance vs f32 reference.
    assert jnp.allclose(out, ref, atol=2e-2, rtol=2e-2), (
        f"mismatch vs JAX reference, max abs diff = {jnp.max(jnp.abs(out - ref))}")

    print("KERNEL_OK")
</pallas_src>

<mosaic_0001>
module attributes {stable_mosaic.version = 11 : i64} {
  func.func @encoder_kernel(%arg0: i32, %arg1: memref<256x32xf32, #tpu.memory_space<vmem>>, %arg2: memref<32x64xbf16, #tpu.memory_space<vmem>>, %arg3: memref<1x64xf32, #tpu.memory_space<vmem>>, %arg4: memref<64x128xbf16, #tpu.memory_space<vmem>>, %arg5: memref<1x128xf32, #tpu.memory_space<vmem>>, %arg6: memref<256x128xf32, #tpu.memory_space<vmem>>) attributes {dimension_semantics = [#tpu.dimension_semantics<parallel>], iteration_bounds = array<i64: 2>, scalar_prefetch = 0 : i64, scratch_operands = 0 : i64, tpu.core_type = #tpu.core_type<tc>, window_params = [{transform_indices = @transform_0, window_bounds = array<i64: 256, 32>}, {pipeline_mode = #tpu.pipeline_mode<synchronous>, transform_indices = @transform_1, window_bounds = array<i64: 32, 64>}, {pipeline_mode = #tpu.pipeline_mode<synchronous>, transform_indices = @transform_2, window_bounds = array<i64: 1, 64>}, {pipeline_mode = #tpu.pipeline_mode<synchronous>, transform_indices = @transform_3, window_bounds = array<i64: 64, 128>}, {pipeline_mode = #tpu.pipeline_mode<synchronous>, transform_indices = @transform_4, window_bounds = array<i64: 1, 128>}, {transform_indices = @transform_5, window_bounds = array<i64: 256, 128>}]} {
    %c0 = arith.constant 0 : index
    %c0_0 = arith.constant 0 : index
    %0 = vector.load %arg1[%c0, %c0_0] : memref<256x32xf32, #tpu.memory_space<vmem>>, vector<256x32xf32>
    %1 = arith.truncf %0 : vector<256x32xf32> to vector<256x32xbf16>
    %c0_1 = arith.constant 0 : index
    %c0_2 = arith.constant 0 : index
    %2 = vector.load %arg2[%c0_1, %c0_2] : memref<32x64xbf16, #tpu.memory_space<vmem>>, vector<32x64xbf16>
    %cst = arith.constant dense<0.000000e+00> : vector<256x64xf32>
    %3 = tpu.matmul %1, %2, %cst {dimension_numbers = #tpu.dot_dimension_numbers<[1], [0], [0], [1], [0, 0, 1, 1], [], []>} : vector<256x32xbf16>, vector<32x64xbf16>, vector<256x64xf32> -> vector<256x64xf32>
    %c0_3 = arith.constant 0 : index
    %c0_4 = arith.constant 0 : index
    %4 = vector.load %arg3[%c0_3, %c0_4] : memref<1x64xf32, #tpu.memory_space<vmem>>, vector<1x64xf32>
    %5 = vector.broadcast %4 : vector<1x64xf32> to vector<256x64xf32>
    %6 = arith.addf %3, %5 : vector<256x64xf32>
    %cst_5 = arith.constant 0.000000e+00 : f32
    %7 = vector.broadcast %cst_5 : f32 to vector<256x64xf32>
    %8 = arith.maximumf %6, %7 : vector<256x64xf32>
    %9 = arith.truncf %8 : vector<256x64xf32> to vector<256x64xbf16>
    %c0_6 = arith.constant 0 : index
    %c0_7 = arith.constant 0 : index
    %10 = vector.load %arg4[%c0_6, %c0_7] : memref<64x128xbf16, #tpu.memory_space<vmem>>, vector<64x128xbf16>
    %cst_8 = arith.constant dense<0.000000e+00> : vector<256x128xf32>
    %11 = tpu.matmul %9, %10, %cst_8 {dimension_numbers = #tpu.dot_dimension_numbers<[1], [0], [0], [1], [0, 0, 1, 1], [], []>} : vector<256x64xbf16>, vector<64x128xbf16>, vector<256x128xf32> -> vector<256x128xf32>
    %c0_9 = arith.constant 0 : index
    %c0_10 = arith.constant 0 : index
    %12 = vector.load %arg5[%c0_9, %c0_10] : memref<1x128xf32, #tpu.memory_space<vmem>>, vector<1x128xf32>
    %13 = vector.broadcast %12 : vector<1x128xf32> to vector<256x128xf32>
    %14 = arith.addf %11, %13 : vector<256x128xf32>
    %15 = arith.negf %14 : vector<256x128xf32>
    %16 = math.exp %15 : vector<256x128xf32>
    %cst_11 = arith.constant 1.000000e+00 : f32
    %17 = vector.broadcast %cst_11 : f32 to vector<256x128xf32>
    %18 = arith.addf %17, %16 : vector<256x128xf32>
    %19 = arith.divf %17, %18 : vector<256x128xf32>
    %c0_12 = arith.constant 0 : index
    %c0_13 = arith.constant 0 : index
    %20 = vector.load %arg6[%c0_12, %c0_13] : memref<256x128xf32, #tpu.memory_space<vmem>>, vector<256x128xf32>
    tpu.vector_store %arg6[%c0_12, %c0_13], %19 {strides = array<i32>} : memref<256x128xf32, #tpu.memory_space<vmem>>, vector<256x128xf32>,
    return
  }
  func.func @transform_0(%arg0: i32) -> (i32, i32) {
    %c0_i32 = arith.constant 0 : i32
    %c0_i32_0 = arith.constant 0 : i32
    return %arg0, %c0_i32 : i32, i32
  }
  func.func @transform_1(%arg0: i32) -> (i32, i32) {
    %c0_i32 = arith.constant 0 : i32
    %c0_i32_0 = arith.constant 0 : i32
    %c0_i32_1 = arith.constant 0 : i32
    return %c0_i32, %c0_i32_0 : i32, i32
  }
  func.func @transform_2(%arg0: i32) -> (i32, i32) {
    %c0_i32 = arith.constant 0 : i32
    %c0_i32_0 = arith.constant 0 : i32
    %c0_i32_1 = arith.constant 0 : i32
    return %c0_i32, %c0_i32_0 : i32, i32
  }
  func.func @transform_3(%arg0: i32) -> (i32, i32) {
    %c0_i32 = arith.constant 0 : i32
    %c0_i32_0 = arith.constant 0 : i32
    %c0_i32_1 = arith.constant 0 : i32
    return %c0_i32, %c0_i32_0 : i32, i32
  }
  func.func @transform_4(%arg0: i32) -> (i32, i32) {
    %c0_i32 = arith.constant 0 : i32
    %c0_i32_0 = arith.constant 0 : i32
    %c0_i32_1 = arith.constant 0 : i32
    return %c0_i32, %c0_i32_0 : i32, i32
  }
  func.func @transform_5(%arg0: i32) -> (i32, i32) {
    %c0_i32 = arith.constant 0 : i32
    %c0_i32_0 = arith.constant 0 : i32
    return %arg0, %c0_i32 : i32, i32
  }
}

</mosaic_0001>

<llo_original>
// kernel: tpu_custom_call.1
$region0: #{tpu_custom_call.1}
  #allocation0 [shape = 'u32[]', space=smem, size = 0x4, offset = 0x4, fixed_abs, tag = 'smem constant byte address 0x4 - core index']
  #allocation1 [shape = 'u32[144,128]{1,0:T(1,128)}', space=vmem, size = 0x12000, scoped, tag = 'internal scratch']
  %s0 = inlined_call_operand.vmem [shape: f32[512,32], index: 0, kind: input, shape index: {}]
  %s1 = inlined_call_operand.vmem [shape: bf16[32,64], index: 1, kind: input, shape index: {}]
  %s2 = inlined_call_operand.vmem [shape: f32[1,64], index: 2, kind: input, shape index: {}]
  %s3 = inlined_call_operand.vmem [shape: bf16[64,128], index: 3, kind: input, shape index: {}]
  %s4 = inlined_call_operand.vmem [shape: f32[1,128], index: 4, kind: input, shape index: {}]
  %s5 = inlined_call_operand.hbm [shape: f32[512,128], index: 5, kind: output, shape index: {}]
  %s6 = sld [smem:[#allocation0]]
  $region53: #{tpu_custom_call.1} parent=0
    _
  %s8 = ssub.s32 1, %s6
  %s9 = scalar_select 0, %s8, %s6
  $region1: #{tpu_custom_call.1} parent=0
    #allocation2 [shape = 'u8[262144]{0}', space=vmem, size = 0x40000, scoped, tag = 'output window, operand 0']
    #allocation3 [shape = 's32[2]{0}', space=sflag, size = 0x8, scoped, tag = 'scoped memory for tpu_custom_call.1']
    %10 = vsyncpa [#allocation3], 0
    %s11 = scalar_lea.sflag [#allocation3], 1
    %12 = vsyncpa %s11, 0
    loop: start=0, step=1, limit=4
    $region2: #{tpu_custom_call.1} parent=1 // loop_pre_header
      _
    $region3: #{tpu_custom_call.1} parent=1 // loop_header
      %s14 = sphi 0, %s18
      %p15 = scmp.ge.s32.totalorder %s14, 4
      %s24 = sphi 0, %s26
      %s27 = sphi 0, %s24
      %s28 = sphi 0, %s27
      %s44 = sphi 0, %s28
      %s48 = sphi 0, %s48
      %s50 = sphi 0, %s48
      %s51 = sphi 0, %s50
      %s65 = sphi 0, %s51
      %s69 = sphi 0, %s69
      %s71 = sphi 0, %s69
      %s72 = sphi 0, %s71
      %s86 = sphi 0, %s72
      %s90 = sphi 0, %s90
      %s92 = sphi 0, %s90
      %s93 = sphi 0, %s92
      %s107 = sphi 0, %s93
      %s111 = sphi 0, %s111
      %s113 = sphi 0, %s111
      %s114 = sphi 0, %s113
      %s128 = sphi 0, %s114
      %s134 = sphi 0, %s136
      %s137 = sphi 0, %s134
      %s138 = sphi 0, %s137
      %s154 = sphi 0, %s138
    $region4: #{tpu_custom_call.1} parent=1 // loop_header_branch
      %17 = sbr.rel (%p15) target = $region8
    $region5: #{tpu_custom_call.1} parent=1 // loop_body
      %s19 = ssub.s32 %s14, 1
      %s20 = ssub.s32 %s14, 2
      %s21 = sadd.s32 %s14, 1
      %s22 = ssub.s32 %s14, %s21
      %p23 = scmp.eq.s32.totalorder %s22, 0
      %s25 = sadd.s32 %s24, 1
      %s26 = scalar_select %p23, %s24, %s25
      %p29 = pneg %p23
      %p30 = scmp.eq.s32.totalorder %s14, 1
      %p31 = por %p29, %p30
      %p32 = scmp.ne.s32.totalorder %s24, %s27
      %p33 = scmp.eq.s32.totalorder %s14, 0
      %p34 = por %p32, %p33
      %p35 = scmp.ne.s32.totalorder %s24, %s27
      %p36 = scmp.eq.s32.totalorder %s19, 1
      %p37 = por %p35, %p36
      %p38 = scmp.ne.s32.totalorder %s27, %s28
      %p39 = scmp.eq.s32.totalorder %s19, 0
      %p40 = por %p38, %p39
      %p41 = scmp.ne.s32.totalorder %s27, %s28
      %p42 = scmp.eq.s32.totalorder %s20, 1
      %p43 = por %p41, %p42
      %p45 = scmp.ne.s32.totalorder %s28, %s44
      %p46 = scmp.eq.s32.totalorder %s20, 0
      %p47 = por %p45, %p46
      %s49 = sadd.s32 %s48, 1
      %p52 = scmp.eq.s32.totalorder %s14, 1
      %p53 = scmp.ne.s32.totalorder %s48, %s50
      %p54 = scmp.eq.s32.totalorder %s14, 0
      %p55 = por %p53, %p54
      %p56 = scmp.ne.s32.totalorder %s48, %s50
      %p57 = scmp.eq.s32.totalorder %s19, 1
      %p58 = por %p56, %p57
      %p59 = scmp.ne.s32.totalorder %s50, %s51
      %p60 = scmp.eq.s32.totalorder %s19, 0
      %p61 = por %p59, %p60
      %p62 = scmp.ne.s32.totalorder %s50, %s51
      %p63 = scmp.eq.s32.totalorder %s20, 1
      %p64 = por %p62, %p63
      %p66 = scmp.ne.s32.totalorder %s51, %s65
      %p67 = scmp.eq.s32.totalorder %s20, 0
      %p68 = por %p66, %p67
      %s70 = sadd.s32 %s69, 1
      %p73 = scmp.eq.s32.totalorder %s14, 1
      %p74 = scmp.ne.s32.totalorder %s69, %s71
      %p75 = scmp.eq.s32.totalorder %s14, 0
      %p76 = por %p74, %p75
      %p77 = scmp.ne.s32.totalorder %s69, %s71
      %p78 = scmp.eq.s32.totalorder %s19, 1
      %p79 = por %p77, %p78
      %p80 = scmp.ne.s32.totalorder %s71, %s72
      %p81 = scmp.eq.s32.totalorder %s19, 0
      %p82 = por %p80, %p81
      %p83 = scmp.ne.s32.totalorder %s71, %s72
      %p84 = scmp.eq.s32.totalorder %s20, 1
      %p85 = por %p83, %p84
      %p87 = scmp.ne.s32.totalorder %s72, %s86
      %p88 = scmp.eq.s32.totalorder %s20, 0
      %p89 = por %p87, %p88
      %s91 = sadd.s32 %s90, 1
      %p94 = scmp.eq.s32.totalorder %s14, 1
      %p95 = scmp.ne.s32.totalorder %s90, %s92
      %p96 = scmp.eq.s32.totalorder %s14, 0
      %p97 = por %p95, %p96
      %p98 = scmp.ne.s32.totalorder %s90, %s92
      %p99 = scmp.eq.s32.totalorder %s19, 1
      %p100 = por %p98, %p99
      %p101 = scmp.ne.s32.totalorder %s92, %s93
      %p102 = scmp.eq.s32.totalorder %s19, 0
      %p103 = por %p101, %p102
      %p104 = scmp.ne.s32.totalorder %s92, %s93
      %p105 = scmp.eq.s32.totalorder %s20, 1
      %p106 = por %p104, %p105
      %p108 = scmp.ne.s32.totalorder %s93, %s107
      %p109 = scmp.eq.s32.totalorder %s20, 0
      %p110 = por %p108, %p109
      %s112 = sadd.s32 %s111, 1
      %p115 = scmp.eq.s32.totalorder %s14, 1
      %p116 = scmp.ne.s32.totalorder %s111, %s113
      %p117 = scmp.eq.s32.totalorder %s14, 0
      %p118 = por %p116, %p117
      %p119 = scmp.ne.s32.totalorder %s111, %s113
      %p120 = scmp.eq.s32.totalorder %s19, 1
      %p121 = por %p119, %p120
      %p122 = scmp.ne.s32.totalorder %s113, %s114
      %p123 = scmp.eq.s32.totalorder %s19, 0
      %p124 = por %p122, %p123
      %p125 = scmp.ne.s32.totalorder %s113, %s114
      %p126 = scmp.eq.s32.totalorder %s20, 1
      %p127 = por %p125, %p126
      %p129 = scmp.ne.s32.totalorder %s114, %s128
      %p130 = scmp.eq.s32.totalorder %s20, 0
      %p131 = por %p129, %p130
      %s132 = ssub.s32 %s14, %s21
      %p133 = scmp.eq.s32.totalorder %s132, 0
      %s135 = sadd.s32 %s134, 1
      %s136 = scalar_select %p133, %s134, %s135
      %p139 = pneg %p133
      %p140 = scmp.eq.s32.totalorder %s14, 1
      %p141 = por %p139, %p140
      %p142 = scmp.ne.s32.totalorder %s134, %s137
      %p143 = scmp.eq.s32.totalorder %s14, 0
      %p144 = por %p142, %p143
      %p145 = scmp.ne.s32.totalorder %s134, %s137
      %p146 = scmp.eq.s32.totalorder %s19, 1
      %p147 = por %p145, %p146
      %p148 = scmp.ne.s32.totalorder %s137, %s138
      %p149 = scmp.eq.s32.totalorder %s19, 0
      %p150 = por %p148, %p149
      %p151 = scmp.ne.s32.totalorder %s137, %s138
      %p152 = scmp.eq.s32.totalorder %s20, 1
      %p153 = por %p151, %p152
      %p155 = scmp.ne.s32.totalorder %s138, %s154
      %p156 = scmp.eq.s32.totalorder %s20, 0
      %p157 = por %p155, %p156
      %p158 = scmp.le.s32.totalorder 1, %s14
      %p159 = scmp.lt.s32.totalorder %s14, 3
      %p160 = pnand %p158, %p159
      %p161 = pneg %p160
      // Predicated region
      $region9: #{tpu_custom_call.1} parent=5 // pred_check
        _
      $region10: #{tpu_custom_call.1} parent=5 // pred_check_branch
        %163 = sbr.rel (%p160) target = $region12
      $region11: #{tpu_custom_call.1} parent=5 // pred_region
        %s164 = ssub.s32 %s14, 1
        // Predicated region
        $region13: #{tpu_custom_call.1} parent=11 // pred_check
          %p165 = pneg %p61
        $region14: #{tpu_custom_call.1} parent=11 // pred_check_branch
          %167 = sbr.rel (%p165) target = $region16
        $region15: #{tpu_custom_call.1} parent=11 // pred_region
          _
        $region16: #{tpu_custom_call.1} parent=11 // pred_fallthru
          _
        // Predicated region
        $region17: #{tpu_custom_call.1} parent=11 // pred_check
          %p168 = pneg %p82
        $region18: #{tpu_custom_call.1} parent=11 // pred_check_branch
          %170 = sbr.rel (%p168) target = $region20
        $region19: #{tpu_custom_call.1} parent=11 // pred_region
          _
        $region20: #{tpu_custom_call.1} parent=11 // pred_fallthru
          _
        // Predicated region
        $region21: #{tpu_custom_call.1} parent=11 // pred_check
          %p171 = pneg %p103
        $region22: #{tpu_custom_call.1} parent=11 // pred_check_branch
          %173 = sbr.rel (%p171) target = $region24
        $region23: #{tpu_custom_call.1} parent=11 // pred_region
          _
        $region24: #{tpu_custom_call.1} parent=11 // pred_fallthru
          _
        // Predicated region
        $region25: #{tpu_custom_call.1} parent=11 // pred_check
          %p174 = pneg %p124
        $region26: #{tpu_custom_call.1} parent=11 // pred_check_branch
          %176 = sbr.rel (%p174) target = $region28
        $region27: #{tpu_custom_call.1} parent=11 // pred_region
          _
        $region28: #{tpu_custom_call.1} parent=11 // pred_fallthru
          _
      $region12: #{tpu_custom_call.1} parent=5 // pred_fallthru
        _
      %p177 = scmp.lt.s32.totalorder %s14, 2
      // Predicated region
      $region29: #{tpu_custom_call.1} parent=5 // pred_check
        %p178 = pneg %p177
      $region30: #{tpu_custom_call.1} parent=5 // pred_check_branch
        %180 = sbr.rel (%p178) target = $region32
      $region31: #{tpu_custom_call.1} parent=5 // pred_region
        // Predicated region
        $region33: #{tpu_custom_call.1} parent=31 // pred_check
          %p181 = pneg %p34
        $region34: #{tpu_custom_call.1} parent=31 // pred_check_branch
          %183 = sbr.rel (%p181) target = $region36
        $region35: #{tpu_custom_call.1} parent=31 // pred_region
          %s184 = smul.u32 32, %s14
          %p185 = scmp.lt.s32.totalorder %s184, 63
          %s186 = scalar_select %p185, %s184, 63
          %s187 = smul.addr %s186, 8
          %s188 = scalar_lea.vmem %s0, %s187
          %s189 = smul.u32 32, %s14
        $region36: #{tpu_custom_call.1} parent=31 // pred_fallthru
          _
      $region32: #{tpu_custom_call.1} parent=5 // pred_fallthru
        _
      %p190 = scmp.le.s32.totalorder 1, %s14
      %p191 = scmp.lt.s32.totalorder %s14, 3
      %p192 = pnand %p190, %p191
      %p193 = pneg %p192
      // Predicated region
      $region37: #{tpu_custom_call.1} parent=5 // pred_check
        _
      $region38: #{tpu_custom_call.1} parent=5 // pred_check_branch
        %195 = sbr.rel (%p192) target = $region40
      $region39: #{tpu_custom_call.1} parent=5 // pred_region
        %s196 = ssub.s32 %s14, 1
        %s197 = smul.u32 32, %s19
        %p198 = scmp.lt.s32.totalorder %s197, 63
        %s199 = scalar_select %p198, %s197, 63
        %s200 = smul.addr %s199, 8
        %s201 = scalar_lea.vmem %s0, %s200
        %p202 = pneg %p40
        %p203 = pneg %p37
        %p204 = pneg %p61
        %p205 = pneg %p58
        %p206 = pneg %p82
        %p207 = pneg %p79
        %p208 = pneg %p103
        %p209 = pneg %p100
        %p210 = pneg %p124
        %p211 = pneg %p121
        %p212 = pneg %p150
        %p213 = pneg %p147
        %s214 = sand.u32 %s137, 1
        %s215 = scalar_lea.sflag [#allocation3], %s214
        %s216 = sand.u32 %s137, 1
        %s217 = smul.addr %s216, 256
        %s218 = scalar_lea.vmem [#allocation2], %s217
        %s219 = smul.u32 32, %s19
        %p220 = scmp.lt.s32.totalorder %s219, 63
        %s221 = scalar_select %p220, %s219, 63
        %s222 = smul.addr %s221, 8
        %s223 = scalar_lea.vmem %s0, %s222
        %s224 = smul.u32 32, %s19
        %s225 = smul.u32 32, %s19
        %v227 = vld [vmem:[%s223] sm:$0xff]
        %v228 = vld [vmem:[%s223 + $0x8] sm:$0xff]
        %v229 = vld [vmem:[%s223 + $0x10] sm:$0xff]
        %v230 = vld [vmem:[%s223 + $0x18] sm:$0xff]
        %v231 = vld [vmem:[%s223 + $0x20] sm:$0xff]
        %v232 = vld [vmem:[%s223 + $0x28] sm:$0xff]
        %v233 = vld [vmem:[%s223 + $0x30] sm:$0xff]
        %v234 = vld [vmem:[%s223 + $0x38] sm:$0xff]
        %v235 = vld [vmem:[%s223 + $0x40] sm:$0xff]
        %v236 = vld [vmem:[%s223 + $0x48] sm:$0xff]
        %v237 = vld [vmem:[%s223 + $0x50] sm:$0xff]
        %v238 = vld [vmem:[%s223 + $0x58] sm:$0xff]
        %v239 = vld [vmem:[%s223 + $0x60] sm:$0xff]
        %v240 = vld [vmem:[%s223 + $0x68] sm:$0xff]
        %v241 = vld [vmem:[%s223 + $0x70] sm:$0xff]
        %v242 = vld [vmem:[%s223 + $0x78] sm:$0xff]
        %v243 = vld [vmem:[%s223 + $0x80] sm:$0xff]
        %v244 = vld [vmem:[%s223 + $0x88] sm:$0xff]
        %v245 = vld [vmem:[%s223 + $0x90] sm:$0xff]
        %v246 = vld [vmem:[%s223 + $0x98] sm:$0xff]
        %v247 = vld [vmem:[%s223 + $0xa0] sm:$0xff]
        %v248 = vld [vmem:[%s223 + $0xa8] sm:$0xff]
        %v249 = vld [vmem:[%s223 + $0xb0] sm:$0xff]
        %v250 = vld [vmem:[%s223 + $0xb8] sm:$0xff]
        %v251 = vld [vmem:[%s223 + $0xc0] sm:$0xff]
        %v252 = vld [vmem:[%s223 + $0xc8] sm:$0xff]
        %v253 = vld [vmem:[%s223 + $0xd0] sm:$0xff]
        %v254 = vld [vmem:[%s223 + $0xd8] sm:$0xff]
        %v255 = vld [vmem:[%s223 + $0xe0] sm:$0xff]
        %v256 = vld [vmem:[%s223 + $0xe8] sm:$0xff]
        %v257 = vld [vmem:[%s223 + $0xf0] sm:$0xff]
        %v258 = vld [vmem:[%s223 + $0xf8] sm:$0xff]
        %v259 = vpack.c.bf16 %v228, %v227
        %v260 = vpack.c.bf16 %v230, %v229
        %v261 = vpack.c.bf16 %v232, %v231
        %v262 = vpack.c.bf16 %v234, %v233
        %v263 = vpack.c.bf16 %v236, %v235
        %v264 = vpack.c.bf16 %v238, %v237
        %v265 = vpack.c.bf16 %v240, %v239
        %v266 = vpack.c.bf16 %v242, %v241
        %v267 = vpack.c.bf16 %v244, %v243
        %v268 = vpack.c.bf16 %v246, %v245
        %v269 = vpack.c.bf16 %v248, %v247
        %v270 = vpack.c.bf16 %v250, %v249
        %v271 = vpack.c.bf16 %v252, %v251
        %v272 = vpack.c.bf16 %v254, %v253
        %v273 = vpack.c.bf16 %v256, %v255
        %v274 = vpack.c.bf16 %v258, %v257
        %v275 = vld [vmem:[%s1] sm:$0xf]
        %v276 = vld [vmem:[%s1 + $0x4] sm:$0xf]
        %v277 = vld [vmem:[%s1 + $0x8] sm:$0xf]
        %v278 = vld [vmem:[%s1 + $0xc] sm:$0xf]
        %v279 = vld [vmem:[%s2] sm:$0x1]
        %v281 = vlaneseq
        %v282 = vshrl.u32 %v281, 7
        %v283 = vsub.s32 0, %v282
        %v284 = vrot.slane %v279, %v283
        %v290 = vunpack.c.l.b16 %v275
        %v291 = vunpack.c.l.b16 %v276
        %v292 = vunpack.c.l.b16 %v277
        %v293 = vunpack.c.l.b16 %v278
        %v294 = vpack.c.b16 %v291, %v290
        %v295 = vpack.c.b16 %v293, %v292
        %vm298 = vcmask 261120
        %v300 = vsel %vm298, %v259, 0
        %v303 = vsel %vm298, %v260, 0
        %v306 = vsel %vm298, %v261, 0
        %v309 = vsel %vm298, %v262, 0
        %v312 = vsel %vm298, %v263, 0
        %v315 = vsel %vm298, %v264, 0
        %v318 = vsel %vm298, %v265, 0
        %v321 = vsel %vm298, %v266, 0
        %v324 = vsel %vm298, %v267, 0
        %v327 = vsel %vm298, %v268, 0
        %v330 = vsel %vm298, %v269, 0
        %v333 = vsel %vm298, %v270, 0
        %v336 = vsel %vm298, %v271, 0
        %v339 = vsel %vm298, %v272, 0
        %v342 = vsel %vm298, %v273, 0
        %v345 = vsel %vm298, %v274, 0
        %347 = vmatprep.subr.bf16.mxu0 0
        %348 = vmatpush1.bf16.msra.mxu0 %v294
        %349 = vmatprep.subr.bf16.mxu0 0
        %350 = vmatpush1.bf16.msra.mxu0 %v295
        %351 = vmatprep.subr.bf16.mxu0 0
        %352 = vmatpush1.bf16.msra.mxu0 0
        %353 = vmatprep.subr.bf16.mxu0 0
        %354 = vmatpush1.bf16.msra.mxu0 0
        %355 = vmatprep.subr.bf16.mxu0 0
        %356 = vmatpush1.bf16.msra.mxu0 0
        %357 = vmatprep.subr.bf16.mxu0 0
        %358 = vmatpush1.bf16.msra.mxu0 0
        %359 = vmatprep.subr.bf16.mxu0 0
        %360 = vmatpush1.bf16.msra.mxu0 0
        %361 = vmatprep.subr.bf16.mxu0 0
        %362 = vmatpush1.bf16.msra.mxu0 0
        %363 = vmatprep.subr.bf16.mxu0 0
        %364 = vmatpush1.bf16.msra.mxu0 0
        %365 = vmatprep.subr.bf16.mxu0 0
        %366 = vmatpush1.bf16.msra.mxu0 0
        %367 = vmatprep.subr.bf16.mxu0 0
        %368 = vmatpush1.bf16.msra.mxu0 0
        %369 = vmatprep.subr.bf16.mxu0 0
        %370 = vmatpush1.bf16.msra.mxu0 0
        %371 = vmatprep.subr.bf16.mxu0 0
        %372 = vmatpush1.bf16.msra.mxu0 0
        %373 = vmatprep.subr.bf16.mxu0 0
        %374 = vmatpush1.bf16.msra.mxu0 0
        %375 = vmatprep.subr.bf16.mxu0 0
        %376 = vmatpush1.bf16.msra.mxu0 0
        %377 = vmatprep.subr.bf16.mxu0 0
        %378 = vmatpush1.bf16.msra.mxu0 0
        %379 = vmatprep.mubr.bf16.mxu0 0
        %380 = vmatmul.mubr.bf16.gmra.mrb[0].mxu0 %v300
        %v381 = vpop.f32.mrb[0].mxu0
        %v382 = vadd.f32 %v284, %v381
        %v383 = vpop.f32.mrb[0].mxu0
        %v384 = vpop.f32.mrb[0].mxu0
        %v385 = vadd.f32 %v284, %v384
        %v386 = vpop.f32.mrb[0].mxu0
        %387 = vmatprep.mubr.bf16.mxu0 0
        %388 = vmatmul.mubr.bf16.gmra.mrb[0].mxu0 %v303
        %v389 = vpop.f32.mrb[0].mxu0
        %v390 = vadd.f32 %v284, %v389
        %v391 = vpop.f32.mrb[0].mxu0
        %v392 = vpop.f32.mrb[0].mxu0
        %v393 = vadd.f32 %v284, %v392
        %v394 = vpop.f32.mrb[0].mxu0
        %395 = vmatprep.mubr.bf16.mxu0 0
        %396 = vmatmul.mubr.bf16.gmra.mrb[0].mxu0 %v306
        %v397 = vpop.f32.mrb[0].mxu0
        %v398 = vadd.f32 %v284, %v397
        %v399 = vpop.f32.mrb[0].mxu0
        %v400 = vpop.f32.mrb[0].mxu0
        %v401 = vadd.f32 %v284, %v400
        %v402 = vpop.f32.mrb[0].mxu0
        %403 = vmatprep.mubr.bf16.mxu0 0
        %404 = vmatmul.mubr.bf16.gmra.mrb[0].mxu0 %v309
        %v405 = vpop.f32.mrb[0].mxu0
        %v406 = vadd.f32 %v284, %v405
        %v407 = vpop.f32.mrb[0].mxu0
        %v408 = vpop.f32.mrb[0].mxu0
        %v409 = vadd.f32 %v284, %v408
        %v410 = vpop.f32.mrb[0].mxu0
        %411 = vmatprep.mubr.bf16.mxu0 0
        %412 = vmatmul.mubr.bf16.gmra.mrb[0].mxu0 %v312
        %v413 = vpop.f32.mrb[0].mxu0
        %v414 = vadd.f32 %v284, %v413
        %v415 = vpop.f32.mrb[0].mxu0
        %v416 = vpop.f32.mrb[0].mxu0
        %v417 = vadd.f32 %v284, %v416
        %v418 = vpop.f32.mrb[0].mxu0
        %419 = vmatprep.mubr.bf16.mxu0 0
        %420 = vmatmul.mubr.bf16.gmra.mrb[0].mxu0 %v315
        %v421 = vpop.f32.mrb[0].mxu0
        %v422 = vadd.f32 %v284, %v421
        %v423 = vpop.f32.mrb[0].mxu0
        %v424 = vpop.f32.mrb[0].mxu0
        %v425 = vadd.f32 %v284, %v424
        %v426 = vpop.f32.mrb[0].mxu0
        %427 = vmatprep.mubr.bf16.mxu0 0
        %428 = vmatmul.mubr.bf16.gmra.mrb[0].mxu0 %v318
        %v429 = vpop.f32.mrb[0].mxu0
        %v430 = vadd.f32 %v284, %v429
        %v431 = vpop.f32.mrb[0].mxu0
        %v432 = vpop.f32.mrb[0].mxu0
        %v433 = vadd.f32 %v284, %v432
        %v434 = vpop.f32.mrb[0].mxu0
        %435 = vmatprep.mubr.bf16.mxu0 0
        %436 = vmatmul.mubr.bf16.gmra.mrb[0].mxu0 %v321
        %v437 = vpop.f32.mrb[0].mxu0
        %v438 = vadd.f32 %v284, %v437
        %v439 = vpop.f32.mrb[0].mxu0
        %v440 = vpop.f32.mrb[0].mxu0
        %v441 = vadd.f32 %v284, %v440
        %v442 = vpop.f32.mrb[0].mxu0
        %443 = vmatprep.mubr.bf16.mxu0 0
        %444 = vmatmul.mubr.bf16.gmra.mrb[0].mxu0 %v324
        %v445 = vpop.f32.mrb[0].mxu0
        %v446 = vadd.f32 %v284, %v445
        %v447 = vpop.f32.mrb[0].mxu0
        %v448 = vpop.f32.mrb[0].mxu0
        %v449 = vadd.f32 %v284, %v448
        %v450 = vpop.f32.mrb[0].mxu0
        %451 = vmatprep.mubr.bf16.mxu0 0
        %452 = vmatmul.mubr.bf16.gmra.mrb[0].mxu0 %v327
        %v453 = vpop.f32.mrb[0].mxu0
        %v454 = vadd.f32 %v284, %v453
        %v455 = vpop.f32.mrb[0].mxu0
        %v456 = vpop.f32.mrb[0].mxu0
        %v457 = vadd.f32 %v284, %v456
        %v458 = vpop.f32.mrb[0].mxu0
        %459 = vmatprep.mubr.bf16.mxu0 0
        %460 = vmatmul.mubr.bf16.gmra.mrb[0].mxu0 %v330
        %v461 = vpop.f32.mrb[0].mxu0
        %v462 = vadd.f32 %v284, %v461
        %v463 = vpop.f32.mrb[0].mxu0
        %v464 = vpop.f32.mrb[0].mxu0
        %v465 = vadd.f32 %v284, %v464
        %v466 = vpop.f32.mrb[0].mxu0
        %467 = vmatprep.mubr.bf16.mxu0 0
        %468 = vmatmul.mubr.bf16.gmra.mrb[0].mxu0 %v333
        %v469 = vpop.f32.mrb[0].mxu0
        %v470 = vadd.f32 %v284, %v469
        %v471 = vpop.f32.mrb[0].mxu0
        %v472 = vpop.f32.mrb[0].mxu0
        %v473 = vadd.f32 %v284, %v472
        %v474 = vpop.f32.mrb[0].mxu0
        %475 = vmatprep.mubr.bf16.mxu0 0
        %476 = vmatmul.mubr.bf16.gmra.mrb[0].mxu0 %v336
        %v477 = vpop.f32.mrb[0].mxu0
        %v478 = vadd.f32 %v284, %v477
        %v479 = vpop.f32.mrb[0].mxu0
        %v480 = vpop.f32.mrb[0].mxu0
        %v481 = vadd.f32 %v284, %v480
        %v482 = vpop.f32.mrb[0].mxu0
        %483 = vmatprep.mubr.bf16.mxu0 0
        %484 = vmatmul.mubr.bf16.gmra.mrb[0].mxu0 %v339
        %v485 = vpop.f32.mrb[0].mxu0
        %v486 = vadd.f32 %v284, %v485
        %v487 = vpop.f32.mrb[0].mxu0
        %v488 = vpop.f32.mrb[0].mxu0
        %v489 = vadd.f32 %v284, %v488
        %v490 = vpop.f32.mrb[0].mxu0
        %491 = vmatprep.mubr.bf16.mxu0 0
        %492 = vmatmul.mubr.bf16.gmra.mrb[0].mxu0 %v342
        %v493 = vpop.f32.mrb[0].mxu0
        %v494 = vadd.f32 %v284, %v493
        %v495 = vpop.f32.mrb[0].mxu0
        %v496 = vpop.f32.mrb[0].mxu0
        %v497 = vadd.f32 %v284, %v496
        %v498 = vpop.f32.mrb[0].mxu0
        %499 = vmatprep.mubr.bf16.mxu0 0
        %500 = vmatmul.mubr.bf16.gmra.mrb[0].mxu0 %v345
        %v501 = vpop.f32.mrb[0].mxu0
        %v502 = vadd.f32 %v284, %v501
        %v503 = vpop.f32.mrb[0].mxu0
        %v504 = vpop.f32.mrb[0].mxu0
        %v505 = vadd.f32 %v284, %v504
        %v506 = vpop.f32.mrb[0].mxu0
        %507 = vdwg.mxu0
        %v508 = vmax.f32 %v382, 0.0
        %v509 = vmax.f32 %v385, 0.0
        %v510 = vmax.f32 %v390, 0.0
        %v511 = vmax.f32 %v393, 0.0
        %v512 = vmax.f32 %v398, 0.0
        %v513 = vmax.f32 %v401, 0.0
        %v514 = vmax.f32 %v406, 0.0
        %v515 = vmax.f32 %v409, 0.0
        %v516 = vmax.f32 %v414, 0.0
        %v517 = vmax.f32 %v417, 0.0
        %v518 = vmax.f32 %v422, 0.0
        %v519 = vmax.f32 %v425, 0.0
        %v520 = vmax.f32 %v430, 0.0
        %v521 = vmax.f32 %v433, 0.0
        %v522 = vmax.f32 %v438, 0.0
        %v523 = vmax.f32 %v441, 0.0
        %v524 = vmax.f32 %v446, 0.0
        %v525 = vmax.f32 %v449, 0.0
        %v526 = vmax.f32 %v454, 0.0
        %v527 = vmax.f32 %v457, 0.0
        %v528 = vmax.f32 %v462, 0.0
        %v529 = vmax.f32 %v465, 0.0
        %v530 = vmax.f32 %v470, 0.0
        %v531 = vmax.f32 %v473, 0.0
        %v532 = vmax.f32 %v478, 0.0
        %v533 = vmax.f32 %v481, 0.0
        %v534 = vmax.f32 %v486, 0.0
        %v535 = vmax.f32 %v489, 0.0
        %v536 = vmax.f32 %v494, 0.0
        %v537 = vmax.f32 %v497, 0.0
        %v538 = vmax.f32 %v502, 0.0
        %v539 = vmax.f32 %v505, 0.0
        %v540 = vpack.c.bf16 %v509, %v508
        %v541 = vpack.c.bf16 %v511, %v510
        %v542 = vpack.c.bf16 %v513, %v512
        %v543 = vpack.c.bf16 %v515, %v514
        %v544 = vpack.c.bf16 %v517, %v516
        %v545 = vpack.c.bf16 %v519, %v518
        %v546 = vpack.c.bf16 %v521, %v520
        %v547 = vpack.c.bf16 %v523, %v522
        %v548 = vpack.c.bf16 %v525, %v524
        %v549 = vpack.c.bf16 %v527, %v526
        %v550 = vpack.c.bf16 %v529, %v528
        %v551 = vpack.c.bf16 %v531, %v530
        %v552 = vpack.c.bf16 %v533, %v532
        %v553 = vpack.c.bf16 %v535, %v534
        %v554 = vpack.c.bf16 %v537, %v536
        %v555 = vpack.c.bf16 %v539, %v538
        %v556 = vld [vmem:[%s3] sm:$0xf]
        %v557 = vld [vmem:[%s3 + $0x4] sm:$0xf]
        %v558 = vld [vmem:[%s3 + $0x8] sm:$0xf]
        %v559 = vld [vmem:[%s3 + $0xc] sm:$0xf]
        %v560 = vld [vmem:[%s3 + $0x10] sm:$0xf]
        %v561 = vld [vmem:[%s3 + $0x14] sm:$0xf]
        %v562 = vld [vmem:[%s3 + $0x18] sm:$0xf]
        %v563 = vld [vmem:[%s3 + $0x1c] sm:$0xf]
        %v564 = vld [vmem:[%s4] sm:$0x1]
        %v566 = vlaneseq
        %v567 = vshrl.u32 %v566, 7
        %v568 = vsub.s32 0, %v567
        %v569 = vrot.slane %v564, %v568
        %v579 = vunpack.c.l.b16 %v556
        %v580 = vunpack.c.l.b16 %v557
        %v581 = vunpack.c.l.b16 %v558
        %v582 = vunpack.c.l.b16 %v559
        %v583 = vunpack.c.l.b16 %v560
        %v584 = vunpack.c.l.b16 %v561
        %v585 = vunpack.c.l.b16 %v562
        %v586 = vunpack.c.l.b16 %v563
        %v587 = vpack.c.b16 %v580, %v579
        %v588 = vpack.c.b16 %v582, %v581
        %v589 = vpack.c.b16 %v584, %v583
        %v590 = vpack.c.b16 %v586, %v585
        %vm595 = vcmask 523264
        %v597 = vsel %vm595, %v540, 0
        %v600 = vsel %vm595, %v541, 0
        %v603 = vsel %vm595, %v542, 0
        %v606 = vsel %vm595, %v543, 0
        %v609 = vsel %vm595, %v544, 0
        %v612 = vsel %vm595, %v545, 0
        %v615 = vsel %vm595, %v546, 0
        %v618 = vsel %vm595, %v547, 0
        %v621 = vsel %vm595, %v548, 0
        %v624 = vsel %vm595, %v549, 0
        %v627 = vsel %vm595, %v550, 0
        %v630 = vsel %vm595, %v551, 0
        %v633 = vsel %vm595, %v552, 0
        %v636 = vsel %vm595, %v553, 0
        %v639 = vsel %vm595, %v554, 0
        %v642 = vsel %vm595, %v555, 0
        %644 = vmatprep.subr.bf16.mxu0 0
        %645 = vmatpush1.bf16.msra.mxu0 %v587
        %646 = vmatprep.subr.bf16.mxu0 0
        %647 = vmatpush1.bf16.msra.mxu0 %v588
        %648 = vmatprep.subr.bf16.mxu0 0
        %649 = vmatpush1.bf16.msra.mxu0 %v589
        %650 = vmatprep.subr.bf16.mxu0 0
        %651 = vmatpush1.bf16.msra.mxu0 %v590
        %652 = vmatprep.subr.bf16.mxu0 0
        %653 = vmatpush1.bf16.msra.mxu0 0
        %654 = vmatprep.subr.bf16.mxu0 0
        %655 = vmatpush1.bf16.msra.mxu0 0
        %656 = vmatprep.subr.bf16.mxu0 0
        %657 = vmatpush1.bf16.msra.mxu0 0
        %658 = vmatprep.subr.bf16.mxu0 0
        %659 = vmatpush1.bf16.msra.mxu0 0
        %660 = vmatprep.subr.bf16.mxu0 0
        %661 = vmatpush1.bf16.msra.mxu0 0
        %662 = vmatprep.subr.bf16.mxu0 0
        %663 = vmatpush1.bf16.msra.mxu0 0
        %664 = vmatprep.subr.bf16.mxu0 0
        %665 = vmatpush1.bf16.msra.mxu0 0
        %666 = vmatprep.subr.bf16.mxu0 0
        %667 = vmatpush1.bf16.msra.mxu0 0
        %668 = vmatprep.subr.bf16.mxu0 0
        %669 = vmatpush1.bf16.msra.mxu0 0
        %670 = vmatprep.subr.bf16.mxu0 0
        %671 = vmatpush1.bf16.msra.mxu0 0
        %672 = vmatprep.subr.bf16.mxu0 0
        %673 = vmatpush1.bf16.msra.mxu0 0
        %674 = vmatprep.subr.bf16.mxu0 0
        %675 = vmatpush1.bf16.msra.mxu0 0
        %676 = vmatprep.mubr.bf16.mxu0 0
        %677 = vmatmul.mubr.bf16.gmra.mrb[0].mxu0 %v597
        %v678 = vpop.f32.mrb[0].mxu0
        %v679 = vadd.f32 %v569, %v678
        %v680 = vpop.f32.mrb[0].mxu0
        %v681 = vpop.f32.mrb[0].mxu0
        %v682 = vadd.f32 %v569, %v681
        %v683 = vpop.f32.mrb[0].mxu0
        %684 = vmatprep.mubr.bf16.mxu0 0
        %685 = vmatmul.mubr.bf16.gmra.mrb[0].mxu0 %v600
        %v686 = vpop.f32.mrb[0].mxu0
        %v687 = vadd.f32 %v569, %v686
        %v688 = vpop.f32.mrb[0].mxu0
        %v689 = vpop.f32.mrb[0].mxu0
        %v690 = vadd.f32 %v569, %v689
        %v691 = vpop.f32.mrb[0].mxu0
        %692 = vmatprep.mubr.bf16.mxu0 0
        %693 = vmatmul.mubr.bf16.gmra.mrb[0].mxu0 %v603
        %v694 = vpop.f32.mrb[0].mxu0
        %v695 = vadd.f32 %v569, %v694
        %v696 = vpop.f32.mrb[0].mxu0
        %v697 = vpop.f32.mrb[0].mxu0
        %v698 = vadd.f32 %v569, %v697
        %v699 = vpop.f32.mrb[0].mxu0
        %700 = vmatprep.mubr.bf16.mxu0 0
        %701 = vmatmul.mubr.bf16.gmra.mrb[0].mxu0 %v606
        %v702 = vpop.f32.mrb[0].mxu0
        %v703 = vadd.f32 %v569, %v702
        %v704 = vpop.f32.mrb[0].mxu0
        %v705 = vpop.f32.mrb[0].mxu0
        %v706 = vadd.f32 %v569, %v705
        %v707 = vpop.f32.mrb[0].mxu0
        %708 = vmatprep.mubr.bf16.mxu0 0
        %709 = vmatmul.mubr.bf16.gmra.mrb[0].mxu0 %v609
        %v710 = vpop.f32.mrb[0].mxu0
        %v711 = vadd.f32 %v569, %v710
        %v712 = vpop.f32.mrb[0].mxu0
        %v713 = vpop.f32.mrb[0].mxu0
        %v714 = vadd.f32 %v569, %v713
        %v715 = vpop.f32.mrb[0].mxu0
        %716 = vmatprep.mubr.bf16.mxu0 0
        %717 = vmatmul.mubr.bf16.gmra.mrb[0].mxu0 %v612
        %v718 = vpop.f32.mrb[0].mxu0
        %v719 = vadd.f32 %v569, %v718
        %v720 = vpop.f32.mrb[0].mxu0
        %v721 = vpop.f32.mrb[0].mxu0
        %v722 = vadd.f32 %v569, %v721
        %v723 = vpop.f32.mrb[0].mxu0
        %724 = vmatprep.mubr.bf16.mxu0 0
        %725 = vmatmul.mubr.bf16.gmra.mrb[0].mxu0 %v615
        %v726 = vpop.f32.mrb[0].mxu0
        %v727 = vadd.f32 %v569, %v726
        %v728 = vpop.f32.mrb[0].mxu0
        %v729 = vpop.f32.mrb[0].mxu0
        %v730 = vadd.f32 %v569, %v729
        %v731 = vpop.f32.mrb[0].mxu0
        %732 = vmatprep.mubr.bf16.mxu0 0
        %733 = vmatmul.mubr.bf16.gmra.mrb[0].mxu0 %v618
        %v734 = vpop.f32.mrb[0].mxu0
        %v735 = vadd.f32 %v569, %v734
        %v736 = vpop.f32.mrb[0].mxu0
        %v737 = vpop.f32.mrb[0].mxu0
        %v738 = vadd.f32 %v569, %v737
        %v739 = vpop.f32.mrb[0].mxu0
        %740 = vmatprep.mubr.bf16.mxu0 0
        %741 = vmatmul.mubr.bf16.gmra.mrb[0].mxu0 %v621
        %v742 = vpop.f32.mrb[0].mxu0
        %v743 = vadd.f32 %v569, %v742
        %v744 = vpop.f32.mrb[0].mxu0
        %v745 = vpop.f32.mrb[0].mxu0
        %v746 = vadd.f32 %v569, %v745
        %v747 = vpop.f32.mrb[0].mxu0
        %748 = vmatprep.mubr.bf16.mxu0 0
        %749 = vmatmul.mubr.bf16.gmra.mrb[0].mxu0 %v624
        %v750 = vpop.f32.mrb[0].mxu0
        %v751 = vadd.f32 %v569, %v750
        %v752 = vpop.f32.mrb[0].mxu0
        %v753 = vpop.f32.mrb[0].mxu0
        %v754 = vadd.f32 %v569, %v753
        %v755 = vpop.f32.mrb[0].mxu0
        %756 = vmatprep.mubr.bf16.mxu0 0
        %757 = vmatmul.mubr.bf16.gmra.mrb[0].mxu0 %v627
        %v758 = vpop.f32.mrb[0].mxu0
        %v759 = vadd.f32 %v569, %v758
        %v760 = vpop.f32.mrb[0].mxu0
        %v761 = vpop.f32.mrb[0].mxu0
        %v762 = vadd.f32 %v569, %v761
        %v763 = vpop.f32.mrb[0].mxu0
        %764 = vmatprep.mubr.bf16.mxu0 0
        %765 = vmatmul.mubr.bf16.gmra.mrb[0].mxu0 %v630
        %v766 = vpop.f32.mrb[0].mxu0
        %v767 = vadd.f32 %v569, %v766
        %v768 = vpop.f32.mrb[0].mxu0
        %v769 = vpop.f32.mrb[0].mxu0
        %v770 = vadd.f32 %v569, %v769
        %v771 = vpop.f32.mrb[0].mxu0
        %772 = vmatprep.mubr.bf16.mxu0 0
        %773 = vmatmul.mubr.bf16.gmra.mrb[0].mxu0 %v633
        %v774 = vpop.f32.mrb[0].mxu0
        %v775 = vadd.f32 %v569, %v774
        %v776 = vpop.f32.mrb[0].mxu0
        %v777 = vpop.f32.mrb[0].mxu0
        %v778 = vadd.f32 %v569, %v777
        %v779 = vpop.f32.mrb[0].mxu0
        %780 = vmatprep.mubr.bf16.mxu0 0
        %781 = vmatmul.mubr.bf16.gmra.mrb[0].mxu0 %v636
        %v782 = vpop.f32.mrb[0].mxu0
        %v783 = vadd.f32 %v569, %v782
        %v784 = vpop.f32.mrb[0].mxu0
        %v785 = vpop.f32.mrb[0].mxu0
        %v786 = vadd.f32 %v569, %v785
        %v787 = vpop.f32.mrb[0].mxu0
        %788 = vmatprep.mubr.bf16.mxu0 0
        %789 = vmatmul.mubr.bf16.gmra.mrb[0].mxu0 %v639
        %v790 = vpop.f32.mrb[0].mxu0
        %v791 = vadd.f32 %v569, %v790
        %v792 = vpop.f32.mrb[0].mxu0
        %v793 = vpop.f32.mrb[0].mxu0
        %v794 = vadd.f32 %v569, %v793
        %v795 = vpop.f32.mrb[0].mxu0
        %796 = vmatprep.mubr.bf16.mxu0 0
        %797 = vmatmul.mubr.bf16.gmra.mrb[0].mxu0 %v642
        %v798 = vpop.f32.mrb[0].mxu0
        %v799 = vadd.f32 %v569, %v798
        %v800 = vpop.f32.mrb[0].mxu0
        %v801 = vpop.f32.mrb[0].mxu0
        %v802 = vadd.f32 %v569, %v801
        %v803 = vpop.f32.mrb[0].mxu0
        %804 = vdwg.mxu0
        %v805 = vxor.u32 %v679, 2147483648
        %v806 = vxor.u32 %v682, 2147483648
        %v807 = vxor.u32 %v687, 2147483648
        %v808 = vxor.u32 %v690, 2147483648
        %v809 = vxor.u32 %v695, 2147483648
        %v810 = vxor.u32 %v698, 2147483648
        %v811 = vxor.u32 %v703, 2147483648
        %v812 = vxor.u32 %v706, 2147483648
        %v813 = vxor.u32 %v711, 2147483648
        %v814 = vxor.u32 %v714, 2147483648
        %v815 = vxor.u32 %v719, 2147483648
        %v816 = vxor.u32 %v722, 2147483648
        %v817 = vxor.u32 %v727, 2147483648
        %v818 = vxor.u32 %v730, 2147483648
        %v819 = vxor.u32 %v735, 2147483648
        %v820 = vxor.u32 %v738, 2147483648
        %v821 = vxor.u32 %v743, 2147483648
        %v822 = vxor.u32 %v746, 2147483648
        %v823 = vxor.u32 %v751, 2147483648
        %v824 = vxor.u32 %v754, 2147483648
        %v825 = vxor.u32 %v759, 2147483648
        %v826 = vxor.u32 %v762, 2147483648
        %v827 = vxor.u32 %v767, 2147483648
        %v828 = vxor.u32 %v770, 2147483648
        %v829 = vxor.u32 %v775, 2147483648
        %v830 = vxor.u32 %v778, 2147483648
        %v831 = vxor.u32 %v783, 2147483648
        %v832 = vxor.u32 %v786, 2147483648
        %v833 = vxor.u32 %v791, 2147483648
        %v834 = vxor.u32 %v794, 2147483648
        %v835 = vxor.u32 %v799, 2147483648
        %v836 = vxor.u32 %v802, 2147483648
        %v837 = vmul.f32 %v805, 1.442695
        %v838 = vpow.pop %v837
        %v839 = vmul.f32 %v806, 1.442695
        %v840 = vpow.pop %v839
        %v841 = vmul.f32 %v807, 1.442695
        %v842 = vpow.pop %v841
        %v843 = vmul.f32 %v808, 1.442695
        %v844 = vpow.pop %v843
        %v845 = vmul.f32 %v809, 1.442695
        %v846 = vpow.pop %v845
        %v847 = vmul.f32 %v810, 1.442695
        %v848 = vpow.pop %v847
        %v849 = vmul.f32 %v811, 1.442695
        %v850 = vpow.pop %v849
        %v851 = vmul.f32 %v812, 1.442695
        %v852 = vpow.pop %v851
        %v853 = vmul.f32 %v813, 1.442695
        %v854 = vpow.pop %v853
        %v855 = vmul.f32 %v814, 1.442695
        %v856 = vpow.pop %v855
        %v857 = vmul.f32 %v815, 1.442695
        %v858 = vpow.pop %v857
        %v859 = vmul.f32 %v816, 1.442695
        %v860 = vpow.pop %v859
        %v861 = vmul.f32 %v817, 1.442695
        %v862 = vpow.pop %v861
        %v863 = vmul.f32 %v818, 1.442695
        %v864 = vpow.pop %v863
        %v865 = vmul.f32 %v819, 1.442695
        %v866 = vpow.pop %v865
        %v867 = vmul.f32 %v820, 1.442695
        %v868 = vpow.pop %v867
        %v869 = vmul.f32 %v821, 1.442695
        %v870 = vpow.pop %v869
        %v871 = vmul.f32 %v822, 1.442695
        %v872 = vpow.pop %v871
        %v873 = vmul.f32 %v823, 1.442695
        %v874 = vpow.pop %v873
        %v875 = vmul.f32 %v824, 1.442695
        %v876 = vpow.pop %v875
        %v877 = vmul.f32 %v825, 1.442695
        %v878 = vpow.pop %v877
        %v879 = vmul.f32 %v826, 1.442695
        %v880 = vpow.pop %v879
        %v881 = vmul.f32 %v827, 1.442695
        %v882 = vpow.pop %v881
        %v883 = vmul.f32 %v828, 1.442695
        %v884 = vpow.pop %v883
        %v885 = vmul.f32 %v829, 1.442695
        %v886 = vpow.pop %v885
        %v887 = vmul.f32 %v830, 1.442695
        %v888 = vpow.pop %v887
        %v889 = vmul.f32 %v831, 1.442695
        %v890 = vpow.pop %v889
        %v891 = vmul.f32 %v832, 1.442695
        %v892 = vpow.pop %v891
        %v893 = vmul.f32 %v833, 1.442695
        %v894 = vpow.pop %v893
        %v895 = vmul.f32 %v834, 1.442695
        %v896 = vpow.pop %v895
        %v897 = vmul.f32 %v835, 1.442695
        %v898 = vpow.pop %v897
        %v899 = vmul.f32 %v836, 1.442695
        %v900 = vpow.pop %v899
        %v901 = vadd.f32 %v838, 1.0
        %v902 = vadd.f32 %v840, 1.0
        %v903 = vadd.f32 %v842, 1.0
        %v904 = vadd.f32 %v844, 1.0
        %v905 = vadd.f32 %v846, 1.0
        %v906 = vadd.f32 %v848, 1.0
        %v907 = vadd.f32 %v850, 1.0
        %v908 = vadd.f32 %v852, 1.0
        %v909 = vadd.f32 %v854, 1.0
        %v910 = vadd.f32 %v856, 1.0
        %v911 = vadd.f32 %v858, 1.0
        %v912 = vadd.f32 %v860, 1.0
        %v913 = vadd.f32 %v862, 1.0
        %v914 = vadd.f32 %v864, 1.0
        %v915 = vadd.f32 %v866, 1.0
        %v916 = vadd.f32 %v868, 1.0
        %v917 = vadd.f32 %v870, 1.0
        %v918 = vadd.f32 %v872, 1.0
        %v919 = vadd.f32 %v874, 1.0
        %v920 = vadd.f32 %v876, 1.0
        %v921 = vadd.f32 %v878, 1.0
        %v922 = vadd.f32 %v880, 1.0
        %v923 = vadd.f32 %v882, 1.0
        %v924 = vadd.f32 %v884, 1.0
        %v925 = vadd.f32 %v886, 1.0
        %v926 = vadd.f32 %v888, 1.0
        %v927 = vadd.f32 %v890, 1.0
        %v928 = vadd.f32 %v892, 1.0
        %v929 = vadd.f32 %v894, 1.0
        %v930 = vadd.f32 %v896, 1.0
        %v931 = vadd.f32 %v898, 1.0
        %v932 = vadd.f32 %v900, 1.0
        %v933 = vrcp.pop %v901
        %v934 = vmul.f32 1.0, %v933
        %v935 = vrcp.pop %v902
        %v936 = vmul.f32 1.0, %v935
        %v937 = vrcp.pop %v903
        %v938 = vmul.f32 1.0, %v937
        %v939 = vrcp.pop %v904
        %v940 = vmul.f32 1.0, %v939
        %v941 = vrcp.pop %v905
        %v942 = vmul.f32 1.0, %v941
        %v943 = vrcp.pop %v906
        %v944 = vmul.f32 1.0, %v943
        %v945 = vrcp.pop %v907
        %v946 = vmul.f32 1.0, %v945
        %v947 = vrcp.pop %v908
        %v948 = vmul.f32 1.0, %v947
        %v949 = vrcp.pop %v909
        %v950 = vmul.f32 1.0, %v949
        %v951 = vrcp.pop %v910
        %v952 = vmul.f32 1.0, %v951
        %v953 = vrcp.pop %v911
        %v954 = vmul.f32 1.0, %v953
        %v955 = vrcp.pop %v912
        %v956 = vmul.f32 1.0, %v955
        %v957 = vrcp.pop %v913
        %v958 = vmul.f32 1.0, %v957
        %v959 = vrcp.pop %v914
        %v960 = vmul.f32 1.0, %v959
        %v961 = vrcp.pop %v915
        %v962 = vmul.f32 1.0, %v961
        %v963 = vrcp.pop %v916
        %v964 = vmul.f32 1.0, %v963
        %v965 = vrcp.pop %v917
        %v966 = vmul.f32 1.0, %v965
        %v967 = vrcp.pop %v918
        %v968 = vmul.f32 1.0, %v967
        %v969 = vrcp.pop %v919
        %v970 = vmul.f32 1.0, %v969
        %v971 = vrcp.pop %v920
        %v972 = vmul.f32 1.0, %v971
        %v973 = vrcp.pop %v921
        %v974 = vmul.f32 1.0, %v973
        %v975 = vrcp.pop %v922
        %v976 = vmul.f32 1.0, %v975
        %v977 = vrcp.pop %v923
        %v978 = vmul.f32 1.0, %v977
        %v979 = vrcp.pop %v924
        %v980 = vmul.f32 1.0, %v979
        %v981 = vrcp.pop %v925
        %v982 = vmul.f32 1.0, %v981
        %v983 = vrcp.pop %v926
        %v984 = vmul.f32 1.0, %v983
        %v985 = vrcp.pop %v927
        %v986 = vmul.f32 1.0, %v985
        %v987 = vrcp.pop %v928
        %v988 = vmul.f32 1.0, %v987
        %v989 = vrcp.pop %v929
        %v990 = vmul.f32 1.0, %v989
        %v991 = vrcp.pop %v930
        %v992 = vmul.f32 1.0, %v991
        %v993 = vrcp.pop %v931
        %v994 = vmul.f32 1.0, %v993
        %v995 = vrcp.pop %v932
        %v996 = vmul.f32 1.0, %v995
        %997 = vst [vmem:[%s218] sm:$0xff] %v934
        %998 = vst [vmem:[%s218 + $0x8] sm:$0xff] %v936
        %999 = vst [vmem:[%s218 + $0x10] sm:$0xff] %v938
        %1000 = vst [vmem:[%s218 + $0x18] sm:$0xff] %v940
        %1001 = vst [vmem:[%s218 + $0x20] sm:$0xff] %v942
        %1002 = vst [vmem:[%s218 + $0x28] sm:$0xff] %v944
        %1003 = vst [vmem:[%s218 + $0x30] sm:$0xff] %v946
        %1004 = vst [vmem:[%s218 + $0x38] sm:$0xff] %v948
        %1005 = vst [vmem:[%s218 + $0x40] sm:$0xff] %v950
        %1006 = vst [vmem:[%s218 + $0x48] sm:$0xff] %v952
        %1007 = vst [vmem:[%s218 + $0x50] sm:$0xff] %v954
        %1008 = vst [vmem:[%s218 + $0x58] sm:$0xff] %v956
        %1009 = vst [vmem:[%s218 + $0x60] sm:$0xff] %v958
        %1010 = vst [vmem:[%s218 + $0x68] sm:$0xff] %v960
        %1011 = vst [vmem:[%s218 + $0x70] sm:$0xff] %v962
        %1012 = vst [vmem:[%s218 + $0x78] sm:$0xff] %v964
        %1013 = vst [vmem:[%s218 + $0x80] sm:$0xff] %v966
        %1014 = vst [vmem:[%s218 + $0x88] sm:$0xff] %v968
        %1015 = vst [vmem:[%s218 + $0x90] sm:$0xff] %v970
        %1016 = vst [vmem:[%s218 + $0x98] sm:$0xff] %v972
        %1017 = vst [vmem:[%s218 + $0xa0] sm:$0xff] %v974
        %1018 = vst [vmem:[%s218 + $0xa8] sm:$0xff] %v976
        %1019 = vst [vmem:[%s218 + $0xb0] sm:$0xff] %v978
        %1020 = vst [vmem:[%s218 + $0xb8] sm:$0xff] %v980
        %1021 = vst [vmem:[%s218 + $0xc0] sm:$0xff] %v982
        %1022 = vst [vmem:[%s218 + $0xc8] sm:$0xff] %v984
        %1023 = vst [vmem:[%s218 + $0xd0] sm:$0xff] %v986
        %1024 = vst [vmem:[%s218 + $0xd8] sm:$0xff] %v988
        %1025 = vst [vmem:[%s218 + $0xe0] sm:$0xff] %v990
        %1026 = vst [vmem:[%s218 + $0xe8] sm:$0xff] %v992
        %1027 = vst [vmem:[%s218 + $0xf0] sm:$0xff] %v994
        %1028 = vst [vmem:[%s218 + $0xf8] sm:$0xff] %v996
        %s1029 = sand.u32 %s137, 1
        %s1030 = scalar_lea.sflag [#allocation3], %s1029
        %s1031 = sand.u32 %s137, 1
        %s1032 = smul.addr %s1031, 256
        %s1033 = scalar_lea.vmem [#allocation2], %s1032
        // Predicated region
        $region41: #{tpu_custom_call.1} parent=39 // pred_check
          %p1034 = pneg %p147
        $region42: #{tpu_custom_call.1} parent=39 // pred_check_branch
          %1036 = sbr.rel (%p1034) target = $region44
        $region43: #{tpu_custom_call.1} parent=39 // pred_region
          %s1037 = smul.u32 32, %s19
          %s1039 = ssub.s32 4096, 4096
          %1040 = vsyncadd %s1030, %s1039
          %s1041 = smul.addr %s1037, 128
          %s1042 = scalar_lea.hbm %s5, %s1041
          %s1043 = sshll.u32 %s1033, 4
          %s1044 = int_to_ptr.vmem [resolvable:$true] %s1043
          %1049 = dma.vmem_to_hbm [thread:$0]  %s1044, 4096, %s1042, %s1030, 128, 128, 8
        $region44: #{tpu_custom_call.1} parent=39 // pred_fallthru
          _
      $region40: #{tpu_custom_call.1} parent=5 // pred_fallthru
        _
      %p1050 = scmp.le.s32.totalorder 2, %s14
      // Predicated region
      $region45: #{tpu_custom_call.1} parent=5 // pred_check
        %p1051 = pneg %p1050
      $region46: #{tpu_custom_call.1} parent=5 // pred_check_branch
        %1053 = sbr.rel (%p1051) target = $region48
      $region47: #{tpu_custom_call.1} parent=5 // pred_region
        %s1054 = ssub.s32 %s14, 2
        // Predicated region
        $region49: #{tpu_custom_call.1} parent=47 // pred_check
          %p1055 = pneg %p153
        $region50: #{tpu_custom_call.1} parent=47 // pred_check_branch
          %1057 = sbr.rel (%p1055) target = $region52
        $region51: #{tpu_custom_call.1} parent=47 // pred_region
          %s1058 = sand.u32 %s138, 1
          %s1059 = scalar_lea.sflag [#allocation3], %s1058
          %s1060 = sand.u32 %s138, 1
          %s1061 = smul.addr %s1060, 256
          %s1062 = scalar_lea.vmem [#allocation2], %s1061
          %1063 = dma.done %s1059, 4096
        $region52: #{tpu_custom_call.1} parent=47 // pred_fallthru
          _
      $region48: #{tpu_custom_call.1} parent=5 // pred_fallthru
        _
    $region6: #{tpu_custom_call.1} parent=1 // loop_footer
      %s18 = sadd.s32 1, %s14
    $region7: #{tpu_custom_call.1} parent=1 // loop_footer_branch
      %13 = sbr.rel target = $region3
    $region8: #{tpu_custom_call.1} parent=1 // loop_exit
      _
    %1064 = vsyncpa [#allocation3], 1
    %s1065 = scalar_lea.sflag [#allocation3], 1
    %1066 = vsyncpa %s1065, 1

</llo_original>
